<compile_context>
chip_gen: v6e
topology: v6e:2x2x1
jax: 0.10.0
libtpu: 0.0.40
codegen_flags: <defaults>
</compile_context>

<pallas_src>
import jax
import jax.numpy as jnp
from jax.experimental import pallas as pl
from jax.experimental.pallas import tpu as pltpu

INPUT_SIZE = 128      # "input_size" of the module
BATCH = 16

_LANE = 128
_SUBLANE = 8
_MAX_TILE_B = 256     # batch tile when the batch is large (fills MXU M dim on v6e/v7x)


def _round_up(n, m):
    return ((n + m - 1) // m) * m


def _autoencoder_kernel(x_ref,
                        w1, b1, w2, b2, w3, b3,      # encoder params
                        w4, b4, w5, b5, w6, b6,      # decoder params
                        o_ref):
    """Fused 6-layer MLP: 5x(Linear+ReLU) then Linear+Sigmoid.

    Weights are bf16 (in_pad, out_pad) zero-padded slabs; biases are f32 (1, out_pad)
    rows. Matmuls accumulate in f32; all elementwise math stays in f32.
    """
    def linear(h, w_ref, b_ref):
        return jnp.dot(h.astype(jnp.bfloat16), w_ref[...],
                       preferred_element_type=jnp.float32) + b_ref[...]

    h = x_ref[...]                                   # f32 activations (no redundant cast)

    # ----- encoder -----
    h = jnp.maximum(linear(h, w1, b1), 0.0)
    h = jnp.maximum(linear(h, w2, b2), 0.0)
    h = jnp.maximum(linear(h, w3, b3), 0.0)

    # ----- decoder -----
    h = jnp.maximum(linear(h, w4, b4), 0.0)
    h = jnp.maximum(linear(h, w5, b5), 0.0)
    h = jax.nn.sigmoid(linear(h, w6, b6))

    o_ref[...] = h.astype(o_ref.dtype)


def deep_autoencoder(x, params):
    """x: (B, input_size) float32. params: list of (W, b) with W shaped (in, out)."""
    B, D = x.shape
    dims = [D] + [w.shape[1] for (w, _) in params]          # [D, 64, 32, 16, 32, 64, D]
    padded_dims = [_round_up(d, _LANE) for d in dims]
    D_pad = padded_dims[0]

    # Batch tiling: one block if small; 256-row tiles (sharded across TCs) otherwise.
    tile_b = min(_round_up(B, _SUBLANE), _MAX_TILE_B)
    B_pad = _round_up(B, tile_b)

    x_p = x
    if (B_pad, D_pad) != (B, D):
        x_p = jnp.zeros((B_pad, D_pad), x.dtype).at[:B, :D].set(x)

    flat = []
    in_specs = [pl.BlockSpec((tile_b, D_pad), lambda i: (i, 0))]   # x: tiled over batch
    for (w, b), d_in_p, d_out_p in zip(params, padded_dims[:-1], padded_dims[1:]):
        d_in, d_out = w.shape
        # Zero-pad to full 128-lane slabs (padded bias entries are exactly 0).
        w_p = jnp.zeros((d_in_p, d_out_p), jnp.float32).at[:d_in, :d_out].set(w)
        b_p = jnp.zeros((1, d_out_p), jnp.float32).at[:, :d_out].set(b)
        flat.append(w_p.astype(jnp.bfloat16))                 # bf16 MXU operand
        flat.append(b_p)                                      # f32 bias row
        in_specs.append(pl.BlockSpec((d_in_p, d_out_p), lambda i: (0, 0)))  # whole weight, resident
        in_specs.append(pl.BlockSpec((1, d_out_p), lambda i: (0, 0)))       # whole bias row

    out_spec = pl.BlockSpec((tile_b, D_pad), lambda i: (i, 0))

    flops = 2 * B * sum(a * b for a, b in zip(dims[:-1], dims[1:]))
    param_bytes = sum(w.size * 2 + b.size * 4 for (w, b) in params)   # bf16 W + f32 b
    bytes_accessed = param_bytes + x.size * 4 + B * D * 4
    cost = pl.CostEstimate(flops=flops,
                           transcendentals=B * D,             # sigmoid exp
                           bytes_accessed=bytes_accessed)

    out = pl.pallas_call(
        _autoencoder_kernel,
        out_shape=jax.ShapeDtypeStruct((B_pad, D_pad), x.dtype),
        grid_spec=pltpu.PrefetchScalarGridSpec(
            num_scalar_prefetch=0,
            grid=(B_pad // tile_b,),
            in_specs=in_specs,
            out_specs=out_spec,
        ),
        compiler_params=pltpu.CompilerParams(
            dimension_semantics=("parallel",),
        ),
        cost_estimate=cost,
    )(x_p, *flat)

    if (B_pad, D_pad) != (B, D):
        out = out[:B, :D]
    return out


def init_params(key, input_size):
    """Deterministic init; weights stored as (in, out) = transpose of torch's (out, in)."""
    dims = [input_size, 64, 32, 16, 32, 64, input_size]
    params = []
    for d_in, d_out in zip(dims[:-1], dims[1:]):
        key, kw, kb = jax.random.split(key, 3)
        bound = 1.0 / jnp.sqrt(d_in)
        w = jax.random.uniform(kw, (d_in, d_out), jnp.float32, -bound, bound)
        b = jax.random.uniform(kb, (d_out,), jnp.float32, -bound, bound)
        params.append((w, b))
    return params


def reference_forward(x, params, cast_bf16=False):
    h = x
    for idx, (w, b) in enumerate(params):
        if cast_bf16:
            y = jnp.dot(h.astype(jnp.bfloat16), w.astype(jnp.bfloat16),
                        preferred_element_type=jnp.float32) + b
        else:
            y = h @ w + b
        h = jnp.maximum(y, 0.0) if idx < len(params) - 1 else jax.nn.sigmoid(y)
    return h


if __name__ == "__main__":
    key = jax.random.PRNGKey(0)
    key, kx = jax.random.split(key)
    x = jax.random.normal(kx, (BATCH, INPUT_SIZE), jnp.float32)

    params = init_params(key, INPUT_SIZE)

    out = jax.block_until_ready(deep_autoencoder(x, params))

    ref_bf16 = reference_forward(x, params, cast_bf16=True)   # same bf16-operand math
    ref_f32 = reference_forward(x, params, cast_bf16=False)   # original f32 semantics

    assert out.shape == (BATCH, INPUT_SIZE)
    assert jnp.allclose(out, ref_bf16, atol=1e-3, rtol=1e-3)
    assert jnp.allclose(out, ref_f32, atol=2e-2, rtol=2e-2)   # bf16-operand tolerance

    print("KERNEL_OK")
</pallas_src>

<mosaic_0001>
module attributes {stable_mosaic.version = 11 : i64} {
  func.func @_autoencoder_kernel(%arg0: i32, %arg1: memref<16x128xf32, #tpu.memory_space<vmem>>, %arg2: memref<128x128xbf16, #tpu.memory_space<vmem>>, %arg3: memref<1x128xf32, #tpu.memory_space<vmem>>, %arg4: memref<128x128xbf16, #tpu.memory_space<vmem>>, %arg5: memref<1x128xf32, #tpu.memory_space<vmem>>, %arg6: memref<128x128xbf16, #tpu.memory_space<vmem>>, %arg7: memref<1x128xf32, #tpu.memory_space<vmem>>, %arg8: memref<128x128xbf16, #tpu.memory_space<vmem>>, %arg9: memref<1x128xf32, #tpu.memory_space<vmem>>, %arg10: memref<128x128xbf16, #tpu.memory_space<vmem>>, %arg11: memref<1x128xf32, #tpu.memory_space<vmem>>, %arg12: memref<128x128xbf16, #tpu.memory_space<vmem>>, %arg13: memref<1x128xf32, #tpu.memory_space<vmem>>, %arg14: memref<16x128xf32, #tpu.memory_space<vmem>>) attributes {dimension_semantics = [#tpu.dimension_semantics<parallel>], iteration_bounds = array<i64: 1>, scalar_prefetch = 0 : i64, scratch_operands = 0 : i64, tpu.core_type = #tpu.core_type<tc>, window_params = [{transform_indices = @transform_0, window_bounds = array<i64: 16, 128>}, {pipeline_mode = #tpu.pipeline_mode<synchronous>, transform_indices = @transform_1, window_bounds = array<i64: 128, 128>}, {pipeline_mode = #tpu.pipeline_mode<synchronous>, transform_indices = @transform_2, window_bounds = array<i64: 1, 128>}, {pipeline_mode = #tpu.pipeline_mode<synchronous>, transform_indices = @transform_3, window_bounds = array<i64: 128, 128>}, {pipeline_mode = #tpu.pipeline_mode<synchronous>, transform_indices = @transform_4, window_bounds = array<i64: 1, 128>}, {pipeline_mode = #tpu.pipeline_mode<synchronous>, transform_indices = @transform_5, window_bounds = array<i64: 128, 128>}, {pipeline_mode = #tpu.pipeline_mode<synchronous>, transform_indices = @transform_6, window_bounds = array<i64: 1, 128>}, {pipeline_mode = #tpu.pipeline_mode<synchronous>, transform_indices = @transform_7, window_bounds = array<i64: 128, 128>}, {pipeline_mode = #tpu.pipeline_mode<synchronous>, transform_indices = @transform_8, window_bounds = array<i64: 1, 128>}, {pipeline_mode = #tpu.pipeline_mode<synchronous>, transform_indices = @transform_9, window_bounds = array<i64: 128, 128>}, {pipeline_mode = #tpu.pipeline_mode<synchronous>, transform_indices = @transform_10, window_bounds = array<i64: 1, 128>}, {pipeline_mode = #tpu.pipeline_mode<synchronous>, transform_indices = @transform_11, window_bounds = array<i64: 128, 128>}, {pipeline_mode = #tpu.pipeline_mode<synchronous>, transform_indices = @transform_12, window_bounds = array<i64: 1, 128>}, {transform_indices = @transform_13, window_bounds = array<i64: 16, 128>}]} {
    %c0 = arith.constant 0 : index
    %c0_0 = arith.constant 0 : index
    %0 = vector.load %arg1[%c0, %c0_0] : memref<16x128xf32, #tpu.memory_space<vmem>>, vector<16x128xf32>
    %1 = arith.truncf %0 : vector<16x128xf32> to vector<16x128xbf16>
    %c0_1 = arith.constant 0 : index
    %c0_2 = arith.constant 0 : index
    %2 = vector.load %arg2[%c0_1, %c0_2] : memref<128x128xbf16, #tpu.memory_space<vmem>>, vector<128x128xbf16>
    %cst = arith.constant dense<0.000000e+00> : vector<16x128xf32>
    %3 = tpu.matmul %1, %2, %cst {dimension_numbers = #tpu.dot_dimension_numbers<[1], [0], [0], [1], [0, 0, 1, 1], [], []>} : vector<16x128xbf16>, vector<128x128xbf16>, vector<16x128xf32> -> vector<16x128xf32>
    %c0_3 = arith.constant 0 : index
    %c0_4 = arith.constant 0 : index
    %4 = vector.load %arg3[%c0_3, %c0_4] : memref<1x128xf32, #tpu.memory_space<vmem>>, vector<1x128xf32>
    %5 = vector.broadcast %4 : vector<1x128xf32> to vector<16x128xf32>
    %6 = arith.addf %3, %5 : vector<16x128xf32>
    %cst_5 = arith.constant 0.000000e+00 : f32
    %7 = vector.broadcast %cst_5 : f32 to vector<16x128xf32>
    %8 = arith.maximumf %6, %7 : vector<16x128xf32>
    %9 = arith.truncf %8 : vector<16x128xf32> to vector<16x128xbf16>
    %c0_6 = arith.constant 0 : index
    %c0_7 = arith.constant 0 : index
    %10 = vector.load %arg4[%c0_6, %c0_7] : memref<128x128xbf16, #tpu.memory_space<vmem>>, vector<128x128xbf16>
    %cst_8 = arith.constant dense<0.000000e+00> : vector<16x128xf32>
    %11 = tpu.matmul %9, %10, %cst_8 {dimension_numbers = #tpu.dot_dimension_numbers<[1], [0], [0], [1], [0, 0, 1, 1], [], []>} : vector<16x128xbf16>, vector<128x128xbf16>, vector<16x128xf32> -> vector<16x128xf32>
    %c0_9 = arith.constant 0 : index
    %c0_10 = arith.constant 0 : index
    %12 = vector.load %arg5[%c0_9, %c0_10] : memref<1x128xf32, #tpu.memory_space<vmem>>, vector<1x128xf32>
    %13 = vector.broadcast %12 : vector<1x128xf32> to vector<16x128xf32>
    %14 = arith.addf %11, %13 : vector<16x128xf32>
    %cst_11 = arith.constant 0.000000e+00 : f32
    %15 = vector.broadcast %cst_11 : f32 to vector<16x128xf32>
    %16 = arith.maximumf %14, %15 : vector<16x128xf32>
    %17 = arith.truncf %16 : vector<16x128xf32> to vector<16x128xbf16>
    %c0_12 = arith.constant 0 : index
    %c0_13 = arith.constant 0 : index
    %18 = vector.load %arg6[%c0_12, %c0_13] : memref<128x128xbf16, #tpu.memory_space<vmem>>, vector<128x128xbf16>
    %cst_14 = arith.constant dense<0.000000e+00> : vector<16x128xf32>
    %19 = tpu.matmul %17, %18, %cst_14 {dimension_numbers = #tpu.dot_dimension_numbers<[1], [0], [0], [1], [0, 0, 1, 1], [], []>} : vector<16x128xbf16>, vector<128x128xbf16>, vector<16x128xf32> -> vector<16x128xf32>
    %c0_15 = arith.constant 0 : index
    %c0_16 = arith.constant 0 : index
    %20 = vector.load %arg7[%c0_15, %c0_16] : memref<1x128xf32, #tpu.memory_space<vmem>>, vector<1x128xf32>
    %21 = vector.broadcast %20 : vector<1x128xf32> to vector<16x128xf32>
    %22 = arith.addf %19, %21 : vector<16x128xf32>
    %cst_17 = arith.constant 0.000000e+00 : f32
    %23 = vector.broadcast %cst_17 : f32 to vector<16x128xf32>
    %24 = arith.maximumf %22, %23 : vector<16x128xf32>
    %25 = arith.truncf %24 : vector<16x128xf32> to vector<16x128xbf16>
    %c0_18 = arith.constant 0 : index
    %c0_19 = arith.constant 0 : index
    %26 = vector.load %arg8[%c0_18, %c0_19] : memref<128x128xbf16, #tpu.memory_space<vmem>>, vector<128x128xbf16>
    %cst_20 = arith.constant dense<0.000000e+00> : vector<16x128xf32>
    %27 = tpu.matmul %25, %26, %cst_20 {dimension_numbers = #tpu.dot_dimension_numbers<[1], [0], [0], [1], [0, 0, 1, 1], [], []>} : vector<16x128xbf16>, vector<128x128xbf16>, vector<16x128xf32> -> vector<16x128xf32>
    %c0_21 = arith.constant 0 : index
    %c0_22 = arith.constant 0 : index
    %28 = vector.load %arg9[%c0_21, %c0_22] : memref<1x128xf32, #tpu.memory_space<vmem>>, vector<1x128xf32>
    %29 = vector.broadcast %28 : vector<1x128xf32> to vector<16x128xf32>
    %30 = arith.addf %27, %29 : vector<16x128xf32>
    %cst_23 = arith.constant 0.000000e+00 : f32
    %31 = vector.broadcast %cst_23 : f32 to vector<16x128xf32>
    %32 = arith.maximumf %30, %31 : vector<16x128xf32>
    %33 = arith.truncf %32 : vector<16x128xf32> to vector<16x128xbf16>
    %c0_24 = arith.constant 0 : index
    %c0_25 = arith.constant 0 : index
    %34 = vector.load %arg10[%c0_24, %c0_25] : memref<128x128xbf16, #tpu.memory_space<vmem>>, vector<128x128xbf16>
    %cst_26 = arith.constant dense<0.000000e+00> : vector<16x128xf32>
    %35 = tpu.matmul %33, %34, %cst_26 {dimension_numbers = #tpu.dot_dimension_numbers<[1], [0], [0], [1], [0, 0, 1, 1], [], []>} : vector<16x128xbf16>, vector<128x128xbf16>, vector<16x128xf32> -> vector<16x128xf32>
    %c0_27 = arith.constant 0 : index
    %c0_28 = arith.constant 0 : index
    %36 = vector.load %arg11[%c0_27, %c0_28] : memref<1x128xf32, #tpu.memory_space<vmem>>, vector<1x128xf32>
    %37 = vector.broadcast %36 : vector<1x128xf32> to vector<16x128xf32>
    %38 = arith.addf %35, %37 : vector<16x128xf32>
    %cst_29 = arith.constant 0.000000e+00 : f32
    %39 = vector.broadcast %cst_29 : f32 to vector<16x128xf32>
    %40 = arith.maximumf %38, %39 : vector<16x128xf32>
    %41 = arith.truncf %40 : vector<16x128xf32> to vector<16x128xbf16>
    %c0_30 = arith.constant 0 : index
    %c0_31 = arith.constant 0 : index
    %42 = vector.load %arg12[%c0_30, %c0_31] : memref<128x128xbf16, #tpu.memory_space<vmem>>, vector<128x128xbf16>
    %cst_32 = arith.constant dense<0.000000e+00> : vector<16x128xf32>
    %43 = tpu.matmul %41, %42, %cst_32 {dimension_numbers = #tpu.dot_dimension_numbers<[1], [0], [0], [1], [0, 0, 1, 1], [], []>} : vector<16x128xbf16>, vector<128x128xbf16>, vector<16x128xf32> -> vector<16x128xf32>
    %c0_33 = arith.constant 0 : index
    %c0_34 = arith.constant 0 : index
    %44 = vector.load %arg13[%c0_33, %c0_34] : memref<1x128xf32, #tpu.memory_space<vmem>>, vector<1x128xf32>
    %45 = vector.broadcast %44 : vector<1x128xf32> to vector<16x128xf32>
    %46 = arith.addf %43, %45 : vector<16x128xf32>
    %47 = arith.negf %46 : vector<16x128xf32>
    %48 = math.exp %47 : vector<16x128xf32>
    %cst_35 = arith.constant 1.000000e+00 : f32
    %49 = vector.broadcast %cst_35 : f32 to vector<16x128xf32>
    %50 = arith.addf %49, %48 : vector<16x128xf32>
    %51 = arith.divf %49, %50 : vector<16x128xf32>
    %c0_36 = arith.constant 0 : index
    %c0_37 = arith.constant 0 : index
    %52 = vector.load %arg14[%c0_36, %c0_37] : memref<16x128xf32, #tpu.memory_space<vmem>>, vector<16x128xf32>
    tpu.vector_store %arg14[%c0_36, %c0_37], %51 {strides = array<i32>} : memref<16x128xf32, #tpu.memory_space<vmem>>, vector<16x128xf32>,
    return
  }
  func.func @transform_0(%arg0: i32) -> (i32, i32) {
    %c0_i32 = arith.constant 0 : i32
    %c0_i32_0 = arith.constant 0 : i32
    return %arg0, %c0_i32 : i32, i32
  }
  func.func @transform_1(%arg0: i32) -> (i32, i32) {
    %c0_i32 = arith.constant 0 : i32
    %c0_i32_0 = arith.constant 0 : i32
    %c0_i32_1 = arith.constant 0 : i32
    return %c0_i32, %c0_i32_0 : i32, i32
  }
  func.func @transform_2(%arg0: i32) -> (i32, i32) {
    %c0_i32 = arith.constant 0 : i32
    %c0_i32_0 = arith.constant 0 : i32
    %c0_i32_1 = arith.constant 0 : i32
    return %c0_i32, %c0_i32_0 : i32, i32
  }
  func.func @transform_3(%arg0: i32) -> (i32, i32) {
    %c0_i32 = arith.constant 0 : i32
    %c0_i32_0 = arith.constant 0 : i32
    %c0_i32_1 = arith.constant 0 : i32
    return %c0_i32, %c0_i32_0 : i32, i32
  }
  func.func @transform_4(%arg0: i32) -> (i32, i32) {
    %c0_i32 = arith.constant 0 : i32
    %c0_i32_0 = arith.constant 0 : i32
    %c0_i32_1 = arith.constant 0 : i32
    return %c0_i32, %c0_i32_0 : i32, i32
  }
  func.func @transform_5(%arg0: i32) -> (i32, i32) {
    %c0_i32 = arith.constant 0 : i32
    %c0_i32_0 = arith.constant 0 : i32
    %c0_i32_1 = arith.constant 0 : i32
    return %c0_i32, %c0_i32_0 : i32, i32
  }
  func.func @transform_6(%arg0: i32) -> (i32, i32) {
    %c0_i32 = arith.constant 0 : i32
    %c0_i32_0 = arith.constant 0 : i32
    %c0_i32_1 = arith.constant 0 : i32
    return %c0_i32, %c0_i32_0 : i32, i32
  }
  func.func @transform_7(%arg0: i32) -> (i32, i32) {
    %c0_i32 = arith.constant 0 : i32
    %c0_i32_0 = arith.constant 0 : i32
    %c0_i32_1 = arith.constant 0 : i32
    return %c0_i32, %c0_i32_0 : i32, i32
  }
  func.func @transform_8(%arg0: i32) -> (i32, i32) {
    %c0_i32 = arith.constant 0 : i32
    %c0_i32_0 = arith.constant 0 : i32
    %c0_i32_1 = arith.constant 0 : i32
    return %c0_i32, %c0_i32_0 : i32, i32
  }
  func.func @transform_9(%arg0: i32) -> (i32, i32) {
    %c0_i32 = arith.constant 0 : i32
    %c0_i32_0 = arith.constant 0 : i32
    %c0_i32_1 = arith.constant 0 : i32
    return %c0_i32, %c0_i32_0 : i32, i32
  }
  func.func @transform_10(%arg0: i32) -> (i32, i32) {
    %c0_i32 = arith.constant 0 : i32
    %c0_i32_0 = arith.constant 0 : i32
    %c0_i32_1 = arith.constant 0 : i32
    return %c0_i32, %c0_i32_0 : i32, i32
  }
  func.func @transform_11(%arg0: i32) -> (i32, i32) {
    %c0_i32 = arith.constant 0 : i32
    %c0_i32_0 = arith.constant 0 : i32
    %c0_i32_1 = arith.constant 0 : i32
    return %c0_i32, %c0_i32_0 : i32, i32
  }
  func.func @transform_12(%arg0: i32) -> (i32, i32) {
    %c0_i32 = arith.constant 0 : i32
    %c0_i32_0 = arith.constant 0 : i32
    %c0_i32_1 = arith.constant 0 : i32
    return %c0_i32, %c0_i32_0 : i32, i32
  }
  func.func @transform_13(%arg0: i32) -> (i32, i32) {
    %c0_i32 = arith.constant 0 : i32
    %c0_i32_0 = arith.constant 0 : i32
    return %arg0, %c0_i32 : i32, i32
  }
}

</mosaic_0001>

<llo_original>
// kernel: tpu_custom_call.1
$region0: #{tpu_custom_call.1}
  #allocation0 [shape = 'u32[]', space=smem, size = 0x4, offset = 0x4, fixed_abs, tag = 'smem constant byte address 0x4 - core index']
  #allocation1 [shape = 'u32[144,128]{1,0:T(1,128)}', space=vmem, size = 0x12000, scoped, tag = 'internal scratch']
  %s0 = inlined_call_operand.hbm [shape: f32[16,128], index: 0, kind: input, shape index: {}]
  %s1 = inlined_call_operand.hbm [shape: bf16[128,128], index: 1, kind: input, shape index: {}]
  %s2 = inlined_call_operand.vmem [shape: f32[1,128], index: 2, kind: input, shape index: {}]
  %s3 = inlined_call_operand.hbm [shape: bf16[128,128], index: 3, kind: input, shape index: {}]
  %s4 = inlined_call_operand.vmem [shape: f32[1,128], index: 4, kind: input, shape index: {}]
  %s5 = inlined_call_operand.hbm [shape: bf16[128,128], index: 5, kind: input, shape index: {}]
  %s6 = inlined_call_operand.vmem [shape: f32[1,128], index: 6, kind: input, shape index: {}]
  %s7 = inlined_call_operand.hbm [shape: bf16[128,128], index: 7, kind: input, shape index: {}]
  %s8 = inlined_call_operand.vmem [shape: f32[1,128], index: 8, kind: input, shape index: {}]
  %s9 = inlined_call_operand.hbm [shape: bf16[128,128], index: 9, kind: input, shape index: {}]
  %s10 = inlined_call_operand.vmem [shape: f32[1,128], index: 10, kind: input, shape index: {}]
  %s11 = inlined_call_operand.hbm [shape: bf16[128,128], index: 11, kind: input, shape index: {}]
  %s12 = inlined_call_operand.vmem [shape: f32[1,128], index: 12, kind: input, shape index: {}]
  %s13 = inlined_call_operand.hbm [shape: f32[16,128], index: 13, kind: output, shape index: {}]
  %s14 = sld [smem:[#allocation0]]
  $region90: #{tpu_custom_call.1} parent=0
    _
  %s16 = ssub.s32 1, %s14
  %s17 = scalar_select 0, %s16, %s14
  $region1: #{tpu_custom_call.1} parent=0
    #allocation2 [shape = 'u8[8192]{0}', space=vmem, size = 0x2000, scoped, tag = 'input window, operand 0, single buffered']
    #allocation3 [shape = 's32[1]{0}', space=sflag, size = 0x4, scoped, tag = 'scoped memory for tpu_custom_call.1']
    #allocation4 [shape = 's32[1]{0}', space=sflag, size = 0x4, scoped, tag = 'scoped memory for tpu_custom_call.1']
    #allocation5 [shape = 'u8[32768]{0}', space=vmem, size = 0x8000, scoped, tag = 'input window, operand 1, single buffered']
    #allocation6 [shape = 's32[1]{0}', space=sflag, size = 0x4, scoped, tag = 'scoped memory for tpu_custom_call.1']
    #allocation7 [shape = 'u8[32768]{0}', space=vmem, size = 0x8000, scoped, tag = 'input window, operand 3, single buffered']
    #allocation8 [shape = 'u8[32768]{0}', space=vmem, size = 0x8000, scoped, tag = 'input window, operand 5, single buffered']
    #allocation9 [shape = 's32[1]{0}', space=sflag, size = 0x4, scoped, tag = 'scoped memory for tpu_custom_call.1']
    #allocation10 [shape = 'u8[32768]{0}', space=vmem, size = 0x8000, scoped, tag = 'input window, operand 7, single buffered']
    #allocation11 [shape = 'u8[32768]{0}', space=vmem, size = 0x8000, scoped, tag = 'input window, operand 9, single buffered']
    #allocation12 [shape = 's32[1]{0}', space=sflag, size = 0x4, scoped, tag = 'scoped memory for tpu_custom_call.1']
    #allocation13 [shape = 'u8[32768]{0}', space=vmem, size = 0x8000, scoped, tag = 'input window, operand 11, single buffered']
    #allocation14 [shape = 'u8[8192]{0}', space=vmem, size = 0x2000, scoped, tag = 'output window, operand 0, single buffered']
    %18 = vsyncpa [#allocation3], 0
    %19 = vsyncpa [#allocation6], 0
    %20 = vsyncpa [#allocation9], 0
    %21 = vsyncpa [#allocation12], 0
    %22 = vsyncpa [#allocation4], 0
    // Predicated region
    $region2: #{tpu_custom_call.1} parent=1 // pred_check
      _
    $region3: #{tpu_custom_call.1} parent=1 // pred_check_branch
      %24 = sbr.rel (0) target = $region5
    $region4: #{tpu_custom_call.1} parent=1 // pred_region
      %s26 = ssub.s32 256, 256
      %27 = vsyncadd [#allocation3], %s26
      %s28 = sshll.u32 [#allocation2], 4
      %s29 = int_to_ptr.vmem [resolvable:$true] %s28
      %34 = dma.hbm_to_vmem [thread:$0]  %s0, 256, %s29, [#allocation3], 128, 128, 8
    $region5: #{tpu_custom_call.1} parent=1 // pred_fallthru
      _
    // Predicated region
    $region6: #{tpu_custom_call.1} parent=1 // pred_check
      _
    $region7: #{tpu_custom_call.1} parent=1 // pred_check_branch
      %36 = sbr.rel (0) target = $region9
    $region8: #{tpu_custom_call.1} parent=1 // pred_region
      %s38 = ssub.s32 1024, 1024
      %39 = vsyncadd [#allocation6], %s38
      %s40 = sshll.u32 [#allocation5], 4
      %s41 = int_to_ptr.vmem [resolvable:$true] %s40
      %46 = dma.hbm_to_vmem [thread:$0]  %s1, 1024, %s41, [#allocation6], 64, 64, 4
    $region9: #{tpu_custom_call.1} parent=1 // pred_fallthru
      _
    // Predicated region
    $region10: #{tpu_custom_call.1} parent=1 // pred_check
      _
    $region11: #{tpu_custom_call.1} parent=1 // pred_check_branch
      %48 = sbr.rel (0) target = $region13
    $region12: #{tpu_custom_call.1} parent=1 // pred_region
      _
    $region13: #{tpu_custom_call.1} parent=1 // pred_fallthru
      _
    // Predicated region
    $region14: #{tpu_custom_call.1} parent=1 // pred_check
      _
    $region15: #{tpu_custom_call.1} parent=1 // pred_check_branch
      %50 = sbr.rel (0) target = $region17
    $region16: #{tpu_custom_call.1} parent=1 // pred_region
      %s52 = ssub.s32 1024, 1024
      %53 = vsyncadd [#allocation6], %s52
      %s54 = sshll.u32 [#allocation7], 4
      %s55 = int_to_ptr.vmem [resolvable:$true] %s54
      %60 = dma.hbm_to_vmem [thread:$0]  %s3, 1024, %s55, [#allocation6], 64, 64, 4
    $region17: #{tpu_custom_call.1} parent=1 // pred_fallthru
      _
    // Predicated region
    $region18: #{tpu_custom_call.1} parent=1 // pred_check
      _
    $region19: #{tpu_custom_call.1} parent=1 // pred_check_branch
      %62 = sbr.rel (0) target = $region21
    $region20: #{tpu_custom_call.1} parent=1 // pred_region
      _
    $region21: #{tpu_custom_call.1} parent=1 // pred_fallthru
      _
    // Predicated region
    $region22: #{tpu_custom_call.1} parent=1 // pred_check
      _
    $region23: #{tpu_custom_call.1} parent=1 // pred_check_branch
      %64 = sbr.rel (0) target = $region25
    $region24: #{tpu_custom_call.1} parent=1 // pred_region
      %s66 = ssub.s32 1024, 1024
      %67 = vsyncadd [#allocation9], %s66
      %s68 = sshll.u32 [#allocation8], 4
      %s69 = int_to_ptr.vmem [resolvable:$true] %s68
      %74 = dma.hbm_to_vmem [thread:$0]  %s5, 1024, %s69, [#allocation9], 64, 64, 4
    $region25: #{tpu_custom_call.1} parent=1 // pred_fallthru
      _
    // Predicated region
    $region26: #{tpu_custom_call.1} parent=1 // pred_check
      _
    $region27: #{tpu_custom_call.1} parent=1 // pred_check_branch
      %76 = sbr.rel (0) target = $region29
    $region28: #{tpu_custom_call.1} parent=1 // pred_region
      _
    $region29: #{tpu_custom_call.1} parent=1 // pred_fallthru
      _
    // Predicated region
    $region30: #{tpu_custom_call.1} parent=1 // pred_check
      _
    $region31: #{tpu_custom_call.1} parent=1 // pred_check_branch
      %78 = sbr.rel (0) target = $region33
    $region32: #{tpu_custom_call.1} parent=1 // pred_region
      %s80 = ssub.s32 1024, 1024
      %81 = vsyncadd [#allocation9], %s80
      %s82 = sshll.u32 [#allocation10], 4
      %s83 = int_to_ptr.vmem [resolvable:$true] %s82
      %88 = dma.hbm_to_vmem [thread:$0]  %s7, 1024, %s83, [#allocation9], 64, 64, 4
    $region33: #{tpu_custom_call.1} parent=1 // pred_fallthru
      _
    // Predicated region
    $region34: #{tpu_custom_call.1} parent=1 // pred_check
      _
    $region35: #{tpu_custom_call.1} parent=1 // pred_check_branch
      %90 = sbr.rel (0) target = $region37
    $region36: #{tpu_custom_call.1} parent=1 // pred_region
      _
    $region37: #{tpu_custom_call.1} parent=1 // pred_fallthru
      _
    // Predicated region
    $region38: #{tpu_custom_call.1} parent=1 // pred_check
      _
    $region39: #{tpu_custom_call.1} parent=1 // pred_check_branch
      %92 = sbr.rel (0) target = $region41
    $region40: #{tpu_custom_call.1} parent=1 // pred_region
      %s94 = ssub.s32 1024, 1024
      %95 = vsyncadd [#allocation12], %s94
      %s96 = sshll.u32 [#allocation11], 4
      %s97 = int_to_ptr.vmem [resolvable:$true] %s96
      %102 = dma.hbm_to_vmem [thread:$0]  %s9, 1024, %s97, [#allocation12], 64, 64, 4
    $region41: #{tpu_custom_call.1} parent=1 // pred_fallthru
      _
    // Predicated region
    $region42: #{tpu_custom_call.1} parent=1 // pred_check
      _
    $region43: #{tpu_custom_call.1} parent=1 // pred_check_branch
      %104 = sbr.rel (0) target = $region45
    $region44: #{tpu_custom_call.1} parent=1 // pred_region
      _
    $region45: #{tpu_custom_call.1} parent=1 // pred_fallthru
      _
    // Predicated region
    $region46: #{tpu_custom_call.1} parent=1 // pred_check
      _
    $region47: #{tpu_custom_call.1} parent=1 // pred_check_branch
      %106 = sbr.rel (0) target = $region49
    $region48: #{tpu_custom_call.1} parent=1 // pred_region
      %s108 = ssub.s32 1024, 1024
      %109 = vsyncadd [#allocation12], %s108
      %s110 = sshll.u32 [#allocation13], 4
      %s111 = int_to_ptr.vmem [resolvable:$true] %s110
      %116 = dma.hbm_to_vmem [thread:$0]  %s11, 1024, %s111, [#allocation12], 64, 64, 4
    $region49: #{tpu_custom_call.1} parent=1 // pred_fallthru
      _
    // Predicated region
    $region50: #{tpu_custom_call.1} parent=1 // pred_check
      _
    $region51: #{tpu_custom_call.1} parent=1 // pred_check_branch
      %118 = sbr.rel (0) target = $region53
    $region52: #{tpu_custom_call.1} parent=1 // pred_region
      _
    $region53: #{tpu_custom_call.1} parent=1 // pred_fallthru
      _
    // Predicated region
    $region54: #{tpu_custom_call.1} parent=1 // pred_check
      _
    $region55: #{tpu_custom_call.1} parent=1 // pred_check_branch
      %120 = sbr.rel (0) target = $region57
    $region56: #{tpu_custom_call.1} parent=1 // pred_region
      %121 = dma.done [#allocation3], 256
    $region57: #{tpu_custom_call.1} parent=1 // pred_fallthru
      _
    // Predicated region
    $region58: #{tpu_custom_call.1} parent=1 // pred_check
      _
    $region59: #{tpu_custom_call.1} parent=1 // pred_check_branch
      %123 = sbr.rel (0) target = $region61
    $region60: #{tpu_custom_call.1} parent=1 // pred_region
      %124 = dma.done [#allocation6], 1024
    $region61: #{tpu_custom_call.1} parent=1 // pred_fallthru
      _
    // Predicated region
    $region62: #{tpu_custom_call.1} parent=1 // pred_check
      _
    $region63: #{tpu_custom_call.1} parent=1 // pred_check_branch
      %126 = sbr.rel (0) target = $region65
    $region64: #{tpu_custom_call.1} parent=1 // pred_region
      %127 = dma.done [#allocation6], 1024
    $region65: #{tpu_custom_call.1} parent=1 // pred_fallthru
      _
    // Predicated region
    $region66: #{tpu_custom_call.1} parent=1 // pred_check
      _
    $region67: #{tpu_custom_call.1} parent=1 // pred_check_branch
      %129 = sbr.rel (0) target = $region69
    $region68: #{tpu_custom_call.1} parent=1 // pred_region
      %130 = dma.done [#allocation9], 1024
    $region69: #{tpu_custom_call.1} parent=1 // pred_fallthru
      _
    // Predicated region
    $region70: #{tpu_custom_call.1} parent=1 // pred_check
      _
    $region71: #{tpu_custom_call.1} parent=1 // pred_check_branch
      %132 = sbr.rel (0) target = $region73
    $region72: #{tpu_custom_call.1} parent=1 // pred_region
      %133 = dma.done [#allocation9], 1024
    $region73: #{tpu_custom_call.1} parent=1 // pred_fallthru
      _
    // Predicated region
    $region74: #{tpu_custom_call.1} parent=1 // pred_check
      _
    $region75: #{tpu_custom_call.1} parent=1 // pred_check_branch
      %135 = sbr.rel (0) target = $region77
    $region76: #{tpu_custom_call.1} parent=1 // pred_region
      %136 = dma.done [#allocation12], 1024
    $region77: #{tpu_custom_call.1} parent=1 // pred_fallthru
      _
    // Predicated region
    $region78: #{tpu_custom_call.1} parent=1 // pred_check
      _
    $region79: #{tpu_custom_call.1} parent=1 // pred_check_branch
      %138 = sbr.rel (0) target = $region81
    $region80: #{tpu_custom_call.1} parent=1 // pred_region
      %139 = dma.done [#allocation12], 1024
    $region81: #{tpu_custom_call.1} parent=1 // pred_fallthru
      _
    %v141 = vld [vmem:[#allocation2] sm:$0xff]
    %v142 = vld [vmem:[#allocation2 + $0x8] sm:$0xff]
    %v143 = vpack.c.bf16 %v142, %v141
    %v144 = vld [vmem:[#allocation5] sm:$0xf]
    %v145 = vld [vmem:[#allocation5 + $0x4] sm:$0xf]
    %v146 = vld [vmem:[#allocation5 + $0x8] sm:$0xf]
    %v147 = vld [vmem:[#allocation5 + $0xc] sm:$0xf]
    %v148 = vld [vmem:[#allocation5 + $0x10] sm:$0xf]
    %v149 = vld [vmem:[#allocation5 + $0x14] sm:$0xf]
    %v150 = vld [vmem:[#allocation5 + $0x18] sm:$0xf]
    %v151 = vld [vmem:[#allocation5 + $0x1c] sm:$0xf]
    %v152 = vld [vmem:[#allocation5 + $0x20] sm:$0xf]
    %v153 = vld [vmem:[#allocation5 + $0x24] sm:$0xf]
    %v154 = vld [vmem:[#allocation5 + $0x28] sm:$0xf]
    %v155 = vld [vmem:[#allocation5 + $0x2c] sm:$0xf]
    %v156 = vld [vmem:[#allocation5 + $0x30] sm:$0xf]
    %v157 = vld [vmem:[#allocation5 + $0x34] sm:$0xf]
    %v158 = vld [vmem:[#allocation5 + $0x38] sm:$0xf]
    %v159 = vld [vmem:[#allocation5 + $0x3c] sm:$0xf]
    %v160 = vld [vmem:[%s2] sm:$0x1]
    %v162 = vlaneseq
    %v163 = vshrl.u32 %v162, 7
    %v164 = vsub.s32 0, %v163
    %v165 = vrot.slane %v160, %v164
    %v183 = vunpack.c.l.b16 %v144
    %v184 = vunpack.c.l.b16 %v145
    %v185 = vunpack.c.l.b16 %v146
    %v186 = vunpack.c.l.b16 %v147
    %v187 = vunpack.c.l.b16 %v148
    %v188 = vunpack.c.l.b16 %v149
    %v189 = vunpack.c.l.b16 %v150
    %v190 = vunpack.c.l.b16 %v151
    %v191 = vunpack.c.l.b16 %v152
    %v192 = vunpack.c.l.b16 %v153
    %v193 = vunpack.c.l.b16 %v154
    %v194 = vunpack.c.l.b16 %v155
    %v195 = vunpack.c.l.b16 %v156
    %v196 = vunpack.c.l.b16 %v157
    %v197 = vunpack.c.l.b16 %v158
    %v198 = vunpack.c.l.b16 %v159
    %v199 = vpack.c.b16 %v184, %v183
    %v200 = vpack.c.b16 %v186, %v185
    %v201 = vpack.c.b16 %v188, %v187
    %v202 = vpack.c.b16 %v190, %v189
    %v203 = vpack.c.b16 %v192, %v191
    %v204 = vpack.c.b16 %v194, %v193
    %v205 = vpack.c.b16 %v196, %v195
    %v206 = vpack.c.b16 %v198, %v197
    %215 = vmatprep.subr.bf16.mxu0 0
    %216 = vmatpush1.bf16.msra.mxu0 %v206
    %217 = vmatprep.subr.bf16.mxu0 0
    %218 = vmatpush1.bf16.msra.mxu0 %v205
    %219 = vmatprep.subr.bf16.mxu0 0
    %220 = vmatpush1.bf16.msra.mxu0 %v204
    %221 = vmatprep.subr.bf16.mxu0 0
    %222 = vmatpush1.bf16.msra.mxu0 %v203
    %223 = vmatprep.subr.bf16.mxu0 0
    %224 = vmatpush1.bf16.msra.mxu0 %v202
    %225 = vmatprep.subr.bf16.mxu0 0
    %226 = vmatpush1.bf16.msra.mxu0 %v201
    %227 = vmatprep.subr.bf16.mxu0 0
    %228 = vmatpush1.bf16.msra.mxu0 %v200
    %229 = vmatprep.subr.bf16.mxu0 0
    %230 = vmatpush1.bf16.msra.mxu0 %v199
    %231 = vmatprep.subr.bf16.mxu0 0
    %232 = vmatpush2.bf16.msra.mxu0 0
    %233 = vmatprep.subr.bf16.mxu0 0
    %234 = vmatpush2.bf16.msra.mxu0 0
    %235 = vmatprep.subr.bf16.mxu0 0
    %236 = vmatpush2.bf16.msra.mxu0 0
    %237 = vmatprep.subr.bf16.mxu0 0
    %238 = vmatpush2.bf16.msra.mxu0 0
    %239 = vmatprep.subr.bf16.mxu0 0
    %240 = vmatpush2.bf16.msra.mxu0 0
    %241 = vmatprep.subr.bf16.mxu0 0
    %242 = vmatpush2.bf16.msra.mxu0 0
    %243 = vmatprep.subr.bf16.mxu0 0
    %244 = vmatpush2.bf16.msra.mxu0 0
    %245 = vmatprep.subr.bf16.mxu0 0
    %246 = vmatpush2.bf16.msra.mxu0 0
    %247 = vmatprep.mubr.bf16.mxu0 0
    %248 = vmatmul.mubr.bf16.gmra.mxu0 %v143
    %v249 = vpop.f32.mrf.mxu0
    %v250 = vadd.f32 %v165, %v249
    %v251 = vpop.f32.mrf.mxu0
    %v252 = vpop.f32.mrf.mxu0
    %v253 = vadd.f32 %v165, %v252
    %v254 = vpop.f32.mrf.mxu0
    %255 = vdwg.mxu0
    %v256 = vmax.f32 %v250, 0.0
    %v257 = vmax.f32 %v253, 0.0
    %v258 = vpack.c.bf16 %v257, %v256
    %v259 = vld [vmem:[#allocation7] sm:$0xf]
    %v260 = vld [vmem:[#allocation7 + $0x4] sm:$0xf]
    %v261 = vld [vmem:[#allocation7 + $0x8] sm:$0xf]
    %v262 = vld [vmem:[#allocation7 + $0xc] sm:$0xf]
    %v263 = vld [vmem:[#allocation7 + $0x10] sm:$0xf]
    %v264 = vld [vmem:[#allocation7 + $0x14] sm:$0xf]
    %v265 = vld [vmem:[#allocation7 + $0x18] sm:$0xf]
    %v266 = vld [vmem:[#allocation7 + $0x1c] sm:$0xf]
    %v267 = vld [vmem:[#allocation7 + $0x20] sm:$0xf]
    %v268 = vld [vmem:[#allocation7 + $0x24] sm:$0xf]
    %v269 = vld [vmem:[#allocation7 + $0x28] sm:$0xf]
    %v270 = vld [vmem:[#allocation7 + $0x2c] sm:$0xf]
    %v271 = vld [vmem:[#allocation7 + $0x30] sm:$0xf]
    %v272 = vld [vmem:[#allocation7 + $0x34] sm:$0xf]
    %v273 = vld [vmem:[#allocation7 + $0x38] sm:$0xf]
    %v274 = vld [vmem:[#allocation7 + $0x3c] sm:$0xf]
    %v275 = vld [vmem:[%s4] sm:$0x1]
    %v277 = vlaneseq
    %v278 = vshrl.u32 %v277, 7
    %v279 = vsub.s32 0, %v278
    %v280 = vrot.slane %v275, %v279
    %v298 = vunpack.c.l.b16 %v259
    %v299 = vunpack.c.l.b16 %v260
    %v300 = vunpack.c.l.b16 %v261
    %v301 = vunpack.c.l.b16 %v262
    %v302 = vunpack.c.l.b16 %v263
    %v303 = vunpack.c.l.b16 %v264
    %v304 = vunpack.c.l.b16 %v265
    %v305 = vunpack.c.l.b16 %v266
    %v306 = vunpack.c.l.b16 %v267
    %v307 = vunpack.c.l.b16 %v268
    %v308 = vunpack.c.l.b16 %v269
    %v309 = vunpack.c.l.b16 %v270
    %v310 = vunpack.c.l.b16 %v271
    %v311 = vunpack.c.l.b16 %v272
    %v312 = vunpack.c.l.b16 %v273
    %v313 = vunpack.c.l.b16 %v274
    %v314 = vpack.c.b16 %v299, %v298
    %v315 = vpack.c.b16 %v301, %v300
    %v316 = vpack.c.b16 %v303, %v302
    %v317 = vpack.c.b16 %v305, %v304
    %v318 = vpack.c.b16 %v307, %v306
    %v319 = vpack.c.b16 %v309, %v308
    %v320 = vpack.c.b16 %v311, %v310
    %v321 = vpack.c.b16 %v313, %v312
    %330 = vmatprep.subr.bf16.mxu0 0
    %331 = vmatpush1.bf16.msra.mxu0 %v321
    %332 = vmatprep.subr.bf16.mxu0 0
    %333 = vmatpush1.bf16.msra.mxu0 %v320
    %334 = vmatprep.subr.bf16.mxu0 0
    %335 = vmatpush1.bf16.msra.mxu0 %v319
    %336 = vmatprep.subr.bf16.mxu0 0
    %337 = vmatpush1.bf16.msra.mxu0 %v318
    %338 = vmatprep.subr.bf16.mxu0 0
    %339 = vmatpush1.bf16.msra.mxu0 %v317
    %340 = vmatprep.subr.bf16.mxu0 0
    %341 = vmatpush1.bf16.msra.mxu0 %v316
    %342 = vmatprep.subr.bf16.mxu0 0
    %343 = vmatpush1.bf16.msra.mxu0 %v315
    %344 = vmatprep.subr.bf16.mxu0 0
    %345 = vmatpush1.bf16.msra.mxu0 %v314
    %346 = vmatprep.subr.bf16.mxu0 0
    %347 = vmatpush2.bf16.msra.mxu0 0
    %348 = vmatprep.subr.bf16.mxu0 0
    %349 = vmatpush2.bf16.msra.mxu0 0
    %350 = vmatprep.subr.bf16.mxu0 0
    %351 = vmatpush2.bf16.msra.mxu0 0
    %352 = vmatprep.subr.bf16.mxu0 0
    %353 = vmatpush2.bf16.msra.mxu0 0
    %354 = vmatprep.subr.bf16.mxu0 0
    %355 = vmatpush2.bf16.msra.mxu0 0
    %356 = vmatprep.subr.bf16.mxu0 0
    %357 = vmatpush2.bf16.msra.mxu0 0
    %358 = vmatprep.subr.bf16.mxu0 0
    %359 = vmatpush2.bf16.msra.mxu0 0
    %360 = vmatprep.subr.bf16.mxu0 0
    %361 = vmatpush2.bf16.msra.mxu0 0
    %362 = vmatprep.mubr.bf16.mxu0 0
    %363 = vmatmul.mubr.bf16.gmra.mxu0 %v258
    %v364 = vpop.f32.mrf.mxu0
    %v365 = vadd.f32 %v280, %v364
    %v366 = vpop.f32.mrf.mxu0
    %v367 = vpop.f32.mrf.mxu0
    %v368 = vadd.f32 %v280, %v367
    %v369 = vpop.f32.mrf.mxu0
    %370 = vdwg.mxu0
    %v371 = vmax.f32 %v365, 0.0
    %v372 = vmax.f32 %v368, 0.0
    %v373 = vpack.c.bf16 %v372, %v371
    %v374 = vld [vmem:[#allocation8] sm:$0xf]
    %v375 = vld [vmem:[#allocation8 + $0x4] sm:$0xf]
    %v376 = vld [vmem:[#allocation8 + $0x8] sm:$0xf]
    %v377 = vld [vmem:[#allocation8 + $0xc] sm:$0xf]
    %v378 = vld [vmem:[#allocation8 + $0x10] sm:$0xf]
    %v379 = vld [vmem:[#allocation8 + $0x14] sm:$0xf]
    %v380 = vld [vmem:[#allocation8 + $0x18] sm:$0xf]
    %v381 = vld [vmem:[#allocation8 + $0x1c] sm:$0xf]
    %v382 = vld [vmem:[#allocation8 + $0x20] sm:$0xf]
    %v383 = vld [vmem:[#allocation8 + $0x24] sm:$0xf]
    %v384 = vld [vmem:[#allocation8 + $0x28] sm:$0xf]
    %v385 = vld [vmem:[#allocation8 + $0x2c] sm:$0xf]
    %v386 = vld [vmem:[#allocation8 + $0x30] sm:$0xf]
    %v387 = vld [vmem:[#allocation8 + $0x34] sm:$0xf]
    %v388 = vld [vmem:[#allocation8 + $0x38] sm:$0xf]
    %v389 = vld [vmem:[#allocation8 + $0x3c] sm:$0xf]
    %v390 = vld [vmem:[%s6] sm:$0x1]
    %v392 = vlaneseq
    %v393 = vshrl.u32 %v392, 7
    %v394 = vsub.s32 0, %v393
    %v395 = vrot.slane %v390, %v394
    %v413 = vunpack.c.l.b16 %v374
    %v414 = vunpack.c.l.b16 %v375
    %v415 = vunpack.c.l.b16 %v376
    %v416 = vunpack.c.l.b16 %v377
    %v417 = vunpack.c.l.b16 %v378
    %v418 = vunpack.c.l.b16 %v379
    %v419 = vunpack.c.l.b16 %v380
    %v420 = vunpack.c.l.b16 %v381
    %v421 = vunpack.c.l.b16 %v382
    %v422 = vunpack.c.l.b16 %v383
    %v423 = vunpack.c.l.b16 %v384
    %v424 = vunpack.c.l.b16 %v385
    %v425 = vunpack.c.l.b16 %v386
    %v426 = vunpack.c.l.b16 %v387
    %v427 = vunpack.c.l.b16 %v388
    %v428 = vunpack.c.l.b16 %v389
    %v429 = vpack.c.b16 %v414, %v413
    %v430 = vpack.c.b16 %v416, %v415
    %v431 = vpack.c.b16 %v418, %v417
    %v432 = vpack.c.b16 %v420, %v419
    %v433 = vpack.c.b16 %v422, %v421
    %v434 = vpack.c.b16 %v424, %v423
    %v435 = vpack.c.b16 %v426, %v425
    %v436 = vpack.c.b16 %v428, %v427
    %445 = vmatprep.subr.bf16.mxu0 0
    %446 = vmatpush1.bf16.msra.mxu0 %v436
    %447 = vmatprep.subr.bf16.mxu0 0
    %448 = vmatpush1.bf16.msra.mxu0 %v435
    %449 = vmatprep.subr.bf16.mxu0 0
    %450 = vmatpush1.bf16.msra.mxu0 %v434
    %451 = vmatprep.subr.bf16.mxu0 0
    %452 = vmatpush1.bf16.msra.mxu0 %v433
    %453 = vmatprep.subr.bf16.mxu0 0
    %454 = vmatpush1.bf16.msra.mxu0 %v432
    %455 = vmatprep.subr.bf16.mxu0 0
    %456 = vmatpush1.bf16.msra.mxu0 %v431
    %457 = vmatprep.subr.bf16.mxu0 0
    %458 = vmatpush1.bf16.msra.mxu0 %v430
    %459 = vmatprep.subr.bf16.mxu0 0
    %460 = vmatpush1.bf16.msra.mxu0 %v429
    %461 = vmatprep.subr.bf16.mxu0 0
    %462 = vmatpush2.bf16.msra.mxu0 0
    %463 = vmatprep.subr.bf16.mxu0 0
    %464 = vmatpush2.bf16.msra.mxu0 0
    %465 = vmatprep.subr.bf16.mxu0 0
    %466 = vmatpush2.bf16.msra.mxu0 0
    %467 = vmatprep.subr.bf16.mxu0 0
    %468 = vmatpush2.bf16.msra.mxu0 0
    %469 = vmatprep.subr.bf16.mxu0 0
    %470 = vmatpush2.bf16.msra.mxu0 0
    %471 = vmatprep.subr.bf16.mxu0 0
    %472 = vmatpush2.bf16.msra.mxu0 0
    %473 = vmatprep.subr.bf16.mxu0 0
    %474 = vmatpush2.bf16.msra.mxu0 0
    %475 = vmatprep.subr.bf16.mxu0 0
    %476 = vmatpush2.bf16.msra.mxu0 0
    %477 = vmatprep.mubr.bf16.mxu0 0
    %478 = vmatmul.mubr.bf16.gmra.mxu0 %v373
    %v479 = vpop.f32.mrf.mxu0
    %v480 = vadd.f32 %v395, %v479
    %v481 = vpop.f32.mrf.mxu0
    %v482 = vpop.f32.mrf.mxu0
    %v483 = vadd.f32 %v395, %v482
    %v484 = vpop.f32.mrf.mxu0
    %485 = vdwg.mxu0
    %v486 = vmax.f32 %v480, 0.0
    %v487 = vmax.f32 %v483, 0.0
    %v488 = vpack.c.bf16 %v487, %v486
    %v489 = vld [vmem:[#allocation10] sm:$0xf]
    %v490 = vld [vmem:[#allocation10 + $0x4] sm:$0xf]
    %v491 = vld [vmem:[#allocation10 + $0x8] sm:$0xf]
    %v492 = vld [vmem:[#allocation10 + $0xc] sm:$0xf]
    %v493 = vld [vmem:[#allocation10 + $0x10] sm:$0xf]
    %v494 = vld [vmem:[#allocation10 + $0x14] sm:$0xf]
    %v495 = vld [vmem:[#allocation10 + $0x18] sm:$0xf]
    %v496 = vld [vmem:[#allocation10 + $0x1c] sm:$0xf]
    %v497 = vld [vmem:[#allocation10 + $0x20] sm:$0xf]
    %v498 = vld [vmem:[#allocation10 + $0x24] sm:$0xf]
    %v499 = vld [vmem:[#allocation10 + $0x28] sm:$0xf]
    %v500 = vld [vmem:[#allocation10 + $0x2c] sm:$0xf]
    %v501 = vld [vmem:[#allocation10 + $0x30] sm:$0xf]
    %v502 = vld [vmem:[#allocation10 + $0x34] sm:$0xf]
    %v503 = vld [vmem:[#allocation10 + $0x38] sm:$0xf]
    %v504 = vld [vmem:[#allocation10 + $0x3c] sm:$0xf]
    %v505 = vld [vmem:[%s8] sm:$0x1]
    %v507 = vlaneseq
    %v508 = vshrl.u32 %v507, 7
    %v509 = vsub.s32 0, %v508
    %v510 = vrot.slane %v505, %v509
    %v528 = vunpack.c.l.b16 %v489
    %v529 = vunpack.c.l.b16 %v490
    %v530 = vunpack.c.l.b16 %v491
    %v531 = vunpack.c.l.b16 %v492
    %v532 = vunpack.c.l.b16 %v493
    %v533 = vunpack.c.l.b16 %v494
    %v534 = vunpack.c.l.b16 %v495
    %v535 = vunpack.c.l.b16 %v496
    %v536 = vunpack.c.l.b16 %v497
    %v537 = vunpack.c.l.b16 %v498
    %v538 = vunpack.c.l.b16 %v499
    %v539 = vunpack.c.l.b16 %v500
    %v540 = vunpack.c.l.b16 %v501
    %v541 = vunpack.c.l.b16 %v502
    %v542 = vunpack.c.l.b16 %v503
    %v543 = vunpack.c.l.b16 %v504
    %v544 = vpack.c.b16 %v529, %v528
    %v545 = vpack.c.b16 %v531, %v530
    %v546 = vpack.c.b16 %v533, %v532
    %v547 = vpack.c.b16 %v535, %v534
    %v548 = vpack.c.b16 %v537, %v536
    %v549 = vpack.c.b16 %v539, %v538
    %v550 = vpack.c.b16 %v541, %v540
    %v551 = vpack.c.b16 %v543, %v542
    %560 = vmatprep.subr.bf16.mxu0 0
    %561 = vmatpush1.bf16.msra.mxu0 %v551
    %562 = vmatprep.subr.bf16.mxu0 0
    %563 = vmatpush1.bf16.msra.mxu0 %v550
    %564 = vmatprep.subr.bf16.mxu0 0
    %565 = vmatpush1.bf16.msra.mxu0 %v549
    %566 = vmatprep.subr.bf16.mxu0 0
    %567 = vmatpush1.bf16.msra.mxu0 %v548
    %568 = vmatprep.subr.bf16.mxu0 0
    %569 = vmatpush1.bf16.msra.mxu0 %v547
    %570 = vmatprep.subr.bf16.mxu0 0
    %571 = vmatpush1.bf16.msra.mxu0 %v546
    %572 = vmatprep.subr.bf16.mxu0 0
    %573 = vmatpush1.bf16.msra.mxu0 %v545
    %574 = vmatprep.subr.bf16.mxu0 0
    %575 = vmatpush1.bf16.msra.mxu0 %v544
    %576 = vmatprep.subr.bf16.mxu0 0
    %577 = vmatpush2.bf16.msra.mxu0 0
    %578 = vmatprep.subr.bf16.mxu0 0
    %579 = vmatpush2.bf16.msra.mxu0 0
    %580 = vmatprep.subr.bf16.mxu0 0
    %581 = vmatpush2.bf16.msra.mxu0 0
    %582 = vmatprep.subr.bf16.mxu0 0
    %583 = vmatpush2.bf16.msra.mxu0 0
    %584 = vmatprep.subr.bf16.mxu0 0
    %585 = vmatpush2.bf16.msra.mxu0 0
    %586 = vmatprep.subr.bf16.mxu0 0
    %587 = vmatpush2.bf16.msra.mxu0 0
    %588 = vmatprep.subr.bf16.mxu0 0
    %589 = vmatpush2.bf16.msra.mxu0 0
    %590 = vmatprep.subr.bf16.mxu0 0
    %591 = vmatpush2.bf16.msra.mxu0 0
    %592 = vmatprep.mubr.bf16.mxu0 0
    %593 = vmatmul.mubr.bf16.gmra.mxu0 %v488
    %v594 = vpop.f32.mrf.mxu0
    %v595 = vadd.f32 %v510, %v594
    %v596 = vpop.f32.mrf.mxu0
    %v597 = vpop.f32.mrf.mxu0
    %v598 = vadd.f32 %v510, %v597
    %v599 = vpop.f32.mrf.mxu0
    %600 = vdwg.mxu0
    %v601 = vmax.f32 %v595, 0.0
    %v602 = vmax.f32 %v598, 0.0
    %v603 = vpack.c.bf16 %v602, %v601
    %v604 = vld [vmem:[#allocation11] sm:$0xf]
    %v605 = vld [vmem:[#allocation11 + $0x4] sm:$0xf]
    %v606 = vld [vmem:[#allocation11 + $0x8] sm:$0xf]
    %v607 = vld [vmem:[#allocation11 + $0xc] sm:$0xf]
    %v608 = vld [vmem:[#allocation11 + $0x10] sm:$0xf]
    %v609 = vld [vmem:[#allocation11 + $0x14] sm:$0xf]
    %v610 = vld [vmem:[#allocation11 + $0x18] sm:$0xf]
    %v611 = vld [vmem:[#allocation11 + $0x1c] sm:$0xf]
    %v612 = vld [vmem:[#allocation11 + $0x20] sm:$0xf]
    %v613 = vld [vmem:[#allocation11 + $0x24] sm:$0xf]
    %v614 = vld [vmem:[#allocation11 + $0x28] sm:$0xf]
    %v615 = vld [vmem:[#allocation11 + $0x2c] sm:$0xf]
    %v616 = vld [vmem:[#allocation11 + $0x30] sm:$0xf]
    %v617 = vld [vmem:[#allocation11 + $0x34] sm:$0xf]
    %v618 = vld [vmem:[#allocation11 + $0x38] sm:$0xf]
    %v619 = vld [vmem:[#allocation11 + $0x3c] sm:$0xf]
    %v620 = vld [vmem:[%s10] sm:$0x1]
    %v622 = vlaneseq
    %v623 = vshrl.u32 %v622, 7
    %v624 = vsub.s32 0, %v623
    %v625 = vrot.slane %v620, %v624
    %v643 = vunpack.c.l.b16 %v604
    %v644 = vunpack.c.l.b16 %v605
    %v645 = vunpack.c.l.b16 %v606
    %v646 = vunpack.c.l.b16 %v607
    %v647 = vunpack.c.l.b16 %v608
    %v648 = vunpack.c.l.b16 %v609
    %v649 = vunpack.c.l.b16 %v610
    %v650 = vunpack.c.l.b16 %v611
    %v651 = vunpack.c.l.b16 %v612
    %v652 = vunpack.c.l.b16 %v613
    %v653 = vunpack.c.l.b16 %v614
    %v654 = vunpack.c.l.b16 %v615
    %v655 = vunpack.c.l.b16 %v616
    %v656 = vunpack.c.l.b16 %v617
    %v657 = vunpack.c.l.b16 %v618
    %v658 = vunpack.c.l.b16 %v619
    %v659 = vpack.c.b16 %v644, %v643
    %v660 = vpack.c.b16 %v646, %v645
    %v661 = vpack.c.b16 %v648, %v647
    %v662 = vpack.c.b16 %v650, %v649
    %v663 = vpack.c.b16 %v652, %v651
    %v664 = vpack.c.b16 %v654, %v653
    %v665 = vpack.c.b16 %v656, %v655
    %v666 = vpack.c.b16 %v658, %v657
    %675 = vmatprep.subr.bf16.mxu0 0
    %676 = vmatpush1.bf16.msra.mxu0 %v666
    %677 = vmatprep.subr.bf16.mxu0 0
    %678 = vmatpush1.bf16.msra.mxu0 %v665
    %679 = vmatprep.subr.bf16.mxu0 0
    %680 = vmatpush1.bf16.msra.mxu0 %v664
    %681 = vmatprep.subr.bf16.mxu0 0
    %682 = vmatpush1.bf16.msra.mxu0 %v663
    %683 = vmatprep.subr.bf16.mxu0 0
    %684 = vmatpush1.bf16.msra.mxu0 %v662
    %685 = vmatprep.subr.bf16.mxu0 0
    %686 = vmatpush1.bf16.msra.mxu0 %v661
    %687 = vmatprep.subr.bf16.mxu0 0
    %688 = vmatpush1.bf16.msra.mxu0 %v660
    %689 = vmatprep.subr.bf16.mxu0 0
    %690 = vmatpush1.bf16.msra.mxu0 %v659
    %691 = vmatprep.subr.bf16.mxu0 0
    %692 = vmatpush2.bf16.msra.mxu0 0
    %693 = vmatprep.subr.bf16.mxu0 0
    %694 = vmatpush2.bf16.msra.mxu0 0
    %695 = vmatprep.subr.bf16.mxu0 0
    %696 = vmatpush2.bf16.msra.mxu0 0
    %697 = vmatprep.subr.bf16.mxu0 0
    %698 = vmatpush2.bf16.msra.mxu0 0
    %699 = vmatprep.subr.bf16.mxu0 0
    %700 = vmatpush2.bf16.msra.mxu0 0
    %701 = vmatprep.subr.bf16.mxu0 0
    %702 = vmatpush2.bf16.msra.mxu0 0
    %703 = vmatprep.subr.bf16.mxu0 0
    %704 = vmatpush2.bf16.msra.mxu0 0
    %705 = vmatprep.subr.bf16.mxu0 0
    %706 = vmatpush2.bf16.msra.mxu0 0
    %707 = vmatprep.mubr.bf16.mxu0 0
    %708 = vmatmul.mubr.bf16.gmra.mxu0 %v603
    %v709 = vpop.f32.mrf.mxu0
    %v710 = vadd.f32 %v625, %v709
    %v711 = vpop.f32.mrf.mxu0
    %v712 = vpop.f32.mrf.mxu0
    %v713 = vadd.f32 %v625, %v712
    %v714 = vpop.f32.mrf.mxu0
    %715 = vdwg.mxu0
    %v716 = vmax.f32 %v710, 0.0
    %v717 = vmax.f32 %v713, 0.0
    %v718 = vpack.c.bf16 %v717, %v716
    %v719 = vld [vmem:[#allocation13] sm:$0xf]
    %v720 = vld [vmem:[#allocation13 + $0x4] sm:$0xf]
    %v721 = vld [vmem:[#allocation13 + $0x8] sm:$0xf]
    %v722 = vld [vmem:[#allocation13 + $0xc] sm:$0xf]
    %v723 = vld [vmem:[#allocation13 + $0x10] sm:$0xf]
    %v724 = vld [vmem:[#allocation13 + $0x14] sm:$0xf]
    %v725 = vld [vmem:[#allocation13 + $0x18] sm:$0xf]
    %v726 = vld [vmem:[#allocation13 + $0x1c] sm:$0xf]
    %v727 = vld [vmem:[#allocation13 + $0x20] sm:$0xf]
    %v728 = vld [vmem:[#allocation13 + $0x24] sm:$0xf]
    %v729 = vld [vmem:[#allocation13 + $0x28] sm:$0xf]
    %v730 = vld [vmem:[#allocation13 + $0x2c] sm:$0xf]
    %v731 = vld [vmem:[#allocation13 + $0x30] sm:$0xf]
    %v732 = vld [vmem:[#allocation13 + $0x34] sm:$0xf]
    %v733 = vld [vmem:[#allocation13 + $0x38] sm:$0xf]
    %v734 = vld [vmem:[#allocation13 + $0x3c] sm:$0xf]
    %v735 = vld [vmem:[%s12] sm:$0x1]
    %v737 = vlaneseq
    %v738 = vshrl.u32 %v737, 7
    %v739 = vsub.s32 0, %v738
    %v740 = vrot.slane %v735, %v739
    %v758 = vunpack.c.l.b16 %v719
    %v759 = vunpack.c.l.b16 %v720
    %v760 = vunpack.c.l.b16 %v721
    %v761 = vunpack.c.l.b16 %v722
    %v762 = vunpack.c.l.b16 %v723
    %v763 = vunpack.c.l.b16 %v724
    %v764 = vunpack.c.l.b16 %v725
    %v765 = vunpack.c.l.b16 %v726
    %v766 = vunpack.c.l.b16 %v727
    %v767 = vunpack.c.l.b16 %v728
    %v768 = vunpack.c.l.b16 %v729
    %v769 = vunpack.c.l.b16 %v730
    %v770 = vunpack.c.l.b16 %v731
    %v771 = vunpack.c.l.b16 %v732
    %v772 = vunpack.c.l.b16 %v733
    %v773 = vunpack.c.l.b16 %v734
    %v774 = vpack.c.b16 %v759, %v758
    %v775 = vpack.c.b16 %v761, %v760
    %v776 = vpack.c.b16 %v763, %v762
    %v777 = vpack.c.b16 %v765, %v764
    %v778 = vpack.c.b16 %v767, %v766
    %v779 = vpack.c.b16 %v769, %v768
    %v780 = vpack.c.b16 %v771, %v770
    %v781 = vpack.c.b16 %v773, %v772
    %790 = vmatprep.subr.bf16.mxu0 0
    %791 = vmatpush1.bf16.msra.mxu0 %v781
    %792 = vmatprep.subr.bf16.mxu0 0
    %793 = vmatpush1.bf16.msra.mxu0 %v780
    %794 = vmatprep.subr.bf16.mxu0 0
    %795 = vmatpush1.bf16.msra.mxu0 %v779
    %796 = vmatprep.subr.bf16.mxu0 0
    %797 = vmatpush1.bf16.msra.mxu0 %v778
    %798 = vmatprep.subr.bf16.mxu0 0
    %799 = vmatpush1.bf16.msra.mxu0 %v777
    %800 = vmatprep.subr.bf16.mxu0 0
    %801 = vmatpush1.bf16.msra.mxu0 %v776
    %802 = vmatprep.subr.bf16.mxu0 0
    %803 = vmatpush1.bf16.msra.mxu0 %v775
    %804 = vmatprep.subr.bf16.mxu0 0
    %805 = vmatpush1.bf16.msra.mxu0 %v774
    %806 = vmatprep.subr.bf16.mxu0 0
    %807 = vmatpush2.bf16.msra.mxu0 0
    %808 = vmatprep.subr.bf16.mxu0 0
    %809 = vmatpush2.bf16.msra.mxu0 0
    %810 = vmatprep.subr.bf16.mxu0 0
    %811 = vmatpush2.bf16.msra.mxu0 0
    %812 = vmatprep.subr.bf16.mxu0 0
    %813 = vmatpush2.bf16.msra.mxu0 0
    %814 = vmatprep.subr.bf16.mxu0 0
    %815 = vmatpush2.bf16.msra.mxu0 0
    %816 = vmatprep.subr.bf16.mxu0 0
    %817 = vmatpush2.bf16.msra.mxu0 0
    %818 = vmatprep.subr.bf16.mxu0 0
    %819 = vmatpush2.bf16.msra.mxu0 0
    %820 = vmatprep.subr.bf16.mxu0 0
    %821 = vmatpush2.bf16.msra.mxu0 0
    %822 = vmatprep.mubr.bf16.mxu0 0
    %823 = vmatmul.mubr.bf16.gmra.mxu0 %v718
    %v824 = vpop.f32.mrf.mxu0
    %v825 = vadd.f32 %v740, %v824
    %v826 = vpop.f32.mrf.mxu0
    %v827 = vpop.f32.mrf.mxu0
    %v828 = vadd.f32 %v740, %v827
    %v829 = vpop.f32.mrf.mxu0
    %830 = vdwg.mxu0
    %v831 = vxor.u32 %v825, 2147483648
    %v832 = vxor.u32 %v828, 2147483648
    %v833 = vmul.f32 %v831, 1.442695
    %v834 = vpow.pop %v833
    %v835 = vmul.f32 %v832, 1.442695
    %v836 = vpow.pop %v835
    %v837 = vadd.f32 %v834, 1.0
    %v838 = vadd.f32 %v836, 1.0
    %v839 = vrcp.pop %v837
    %v840 = vmul.f32 1.0, %v839
    %v841 = vrcp.pop %v838
    %v842 = vmul.f32 1.0, %v841
    %843 = vst [vmem:[#allocation14] sm:$0xff] %v840
    %844 = vst [vmem:[#allocation14 + $0x8] sm:$0xff] %v842
    // Predicated region
    $region82: #{tpu_custom_call.1} parent=1 // pred_check
      _
    $region83: #{tpu_custom_call.1} parent=1 // pred_check_branch
      %846 = sbr.rel (0) target = $region85
    $region84: #{tpu_custom_call.1} parent=1 // pred_region
      %s848 = ssub.s32 256, 256
      %849 = vsyncadd [#allocation4], %s848
      %s850 = sshll.u32 [#allocation14], 4
      %s851 = int_to_ptr.vmem [resolvable:$true] %s850
      %856 = dma.vmem_to_hbm [thread:$0]  %s851, 256, %s13, [#allocation4], 128, 128, 8
    $region85: #{tpu_custom_call.1} parent=1 // pred_fallthru
      _
    // Predicated region
    $region86: #{tpu_custom_call.1} parent=1 // pred_check
      _
    $region87: #{tpu_custom_call.1} parent=1 // pred_check_branch
      %858 = sbr.rel (0) target = $region89
    $region88: #{tpu_custom_call.1} parent=1 // pred_region
      %859 = dma.done [#allocation4], 256
    $region89: #{tpu_custom_call.1} parent=1 // pred_fallthru
      _
    %860 = vsyncpa [#allocation3], 1
    %861 = vsyncpa [#allocation6], 1
    %862 = vsyncpa [#allocation9], 1
    %863 = vsyncpa [#allocation12], 1
    %864 = vsyncpa [#allocation4], 1

</llo_original>
